<compile_context>
chip_gen: v5e
topology: v5e:2x2
jax: 0.10.0
libtpu: 0.0.40
codegen_flags: <defaults>
</compile_context>

<pallas_src>
import jax
import jax.numpy as jnp
from jax.experimental import pallas as pl
from jax.experimental.pallas import tpu as pltpu


def _round_up(x, m):
    return ((x + m - 1) // m) * m


def _vmem_limit_bytes():
    """~75% of physical VMEM: ~96 MiB on v5e/v6e (128 MiB), ~48 MiB on v7x (64 MiB)."""
    cap = 128 * 1024 * 1024
    try:
        cap = int(pltpu.get_tpu_info().vmem_capacity_bytes)
    except Exception:
        pass
    return max(16 * 1024 * 1024, (cap * 3) // 4)


def _single_buffered_spec(block_shape, index_map):
    """Constant-index weight: fetch once, single buffer. Falls back if unsupported."""
    try:
        return pl.BlockSpec(block_shape, index_map, pipeline_mode=pl.Buffered(1))
    except (AttributeError, TypeError):
        return pl.BlockSpec(block_shape, index_map)


def _lora_kernel(x_ref, wd_ref, wu_ref, scale_ref, o_ref):
    # x_ref    : (TM, K)   activation tile (resident across the N grid axis)
    # wd_ref   : (K, R)    down.weight.T   (resident, fetched once)
    # wu_ref   : (R, TN)   up.weight.T tile
    # scale_ref: (1, 1)    f32 scalar in SMEM
    # o_ref    : (TM, TN)  output tile
    h = jnp.dot(x_ref[...], wd_ref[...], preferred_element_type=jnp.float32)
    # NOTE: h is cast to the weight dtype for the MXU; accumulation stays f32.
    y = jnp.dot(h.astype(wu_ref.dtype), wu_ref[...],
                preferred_element_type=jnp.float32)
    # Scale + cast in the f32 epilogue (free filler under DMA / matmul).
    o_ref[...] = (y * scale_ref[0, 0]).astype(o_ref.dtype)


def lora_forward(x, down_w, up_w, scale=1.0, *, use_pallas=None,
                 tm_cap=4096, tn_cap=2048):
    """x: (..., in_features); down_w: (rank, in_features); up_w: (out_features, rank)."""
    orig_shape = x.shape
    in_features = orig_shape[-1]
    rank = down_w.shape[0]
    out_features = up_w.shape[0]
    dtype = x.dtype
    itemsize = jnp.dtype(dtype).itemsize

    x2d = x.reshape(-1, in_features)
    m = x2d.shape[0]

    wd_t = down_w.T.astype(dtype)                      # (K, R)
    wu_t = up_w.T.astype(dtype)                        # (R, N)

    if use_pallas is None:
        # Tiny problems: pallas_call fixed overhead + lane padding dominate and
        # XLA fuses this trivially -> plain fused matmul path.
        act_bytes = m * (in_features + out_features) * itemsize
        use_pallas = act_bytes >= (1 << 20) and max(in_features, out_features) >= 256

    if not use_pallas:
        h = jnp.dot(x2d, wd_t, preferred_element_type=jnp.float32)
        y = jnp.dot(h.astype(dtype), wu_t, preferred_element_type=jnp.float32)
        y = (y * jnp.float32(scale)).astype(dtype)
        return y.reshape(*orig_shape[:-1], out_features)

    # --- N handling: pad to one full 128-lane group only when narrower than 128.
    n_eff = 128 if out_features < 128 else out_features
    if n_eff != out_features:
        wu_t = jnp.pad(wu_t, ((0, 0), (0, n_eff - out_features)))

    # --- N tile: bounds VMEM independent of out_features (v7x: 64 MiB VMEM).
    tn_cap = max(128, (int(tn_cap) // 128) * 128)
    tn = n_eff if n_eff <= tn_cap else tn_cap          # full dim, or a 128-multiple

    # --- M tile from a VMEM byte budget (biggest tile that fits the limit).
    vmem_limit = _vmem_limit_bytes()
    # Resident weights (counted double-buffered to be safe even without Buffered(1)):
    # wd is lane-padded rank->128 in VMEM; wu tile is sublane-padded rank->8.
    weights_vmem = 2 * (in_features * 128 * itemsize) + 2 * (8 * tn * itemsize)
    budget = max(vmem_limit - weights_vmem - (4 << 20), 2 << 20)
    row_align = 8 * max(1, 4 // itemsize)              # 8 f32 / 16 bf16 / 32 int8
    tm = budget // (2 * (in_features + tn) * itemsize)  # double-buffered x + y tiles
    tm = max(row_align, min(int(tm), int(tm_cap)))
    tm = (tm // row_align) * row_align
    tm = min(tm, _round_up(m, row_align))

    grid = (pl.cdiv(m, tm), pl.cdiv(n_eff, tn))

    scale_arr = jnp.array([[scale]], dtype=jnp.float32)

    flops = 2 * m * in_features * rank + 2 * m * rank * n_eff
    bytes_accessed = (m * (in_features + n_eff)
                      + in_features * rank + rank * n_eff) * itemsize
    cost = pl.CostEstimate(flops=int(flops), transcendentals=0,
                           bytes_accessed=int(bytes_accessed))

    out2d = pl.pallas_call(
        _lora_kernel,
        out_shape=jax.ShapeDtypeStruct((m, n_eff), dtype),
        grid=grid,
        in_specs=[
            # x: constant in j -> resident across the N axis, no re-DMA.
            pl.BlockSpec((tm, in_features), lambda i, j: (i, 0)),
            # down.weight.T: constant index -> fetched once, single-buffered.
            _single_buffered_spec((in_features, rank), lambda i, j: (0, 0)),
            # up.weight.T: tiled over N (tiny tile; default double buffering).
            pl.BlockSpec((rank, tn), lambda i, j: (0, j)),
            # scale scalar in SMEM.
            pl.BlockSpec(memory_space=pltpu.SMEM),
        ],
        out_specs=pl.BlockSpec((tm, tn), lambda i, j: (i, j)),
        compiler_params=pltpu.CompilerParams(
            dimension_semantics=("parallel", "arbitrary"),
            vmem_limit_bytes=int(vmem_limit)),
        cost_estimate=cost,
    )(x2d, wd_t, wu_t, scale_arr)

    if n_eff != out_features:
        out2d = out2d[:, :out_features]     # only when out_features < 128 (cheap)
    return out2d.reshape(*orig_shape[:-1], out_features)


if __name__ == "__main__":
    # Small shapes consistent with the module: hidden=32, rank=4.
    batch, seq, in_features, out_features, rank = 2, 8, 32, 32, 4

    key = jax.random.PRNGKey(0)
    kx, kd, ku = jax.random.split(key, 3)

    x = jax.random.normal(kx, (batch, seq, in_features), dtype=jnp.float32)

    # Param init matching nn.init in __init__:
    #   down.weight ~ Normal(std = 1/rank), up.weight = zeros.
    down_w = (1.0 / rank) * jax.random.normal(
        kd, (rank, in_features), dtype=jnp.float32)
    up_w = jnp.zeros((out_features, rank), dtype=jnp.float32)
    scale = 1.0

    # 1) Forward with the module's actual init (up = zeros -> y = 0); force
    #    the Pallas path so the kernel itself is exercised at these sizes.
    y = lora_forward(x, down_w, up_w, scale, use_pallas=True)
    jax.block_until_ready(y)
    y_ref = (x @ down_w.T) @ up_w.T * scale
    assert y.shape == (batch, seq, out_features)
    assert jnp.allclose(y, y_ref, atol=1e-5), "mismatch vs reference (zero up)"

    # 2) Non-zero up weight + non-trivial scale.
    up_w2 = 0.1 * jax.random.normal(ku, (out_features, rank), dtype=jnp.float32)
    scale2 = 0.5
    y2 = lora_forward(x, down_w, up_w2, scale2, use_pallas=True)
    jax.block_until_ready(y2)
    y2_ref = (x @ down_w.T) @ up_w2.T * scale2
    assert jnp.allclose(y2, y2_ref, atol=1e-5), "mismatch vs reference (nonzero up)"

    # 3) Multi-tile grid with partial last blocks in both M and N (forced by
    #    capping the tiles), still at small sizes.
    b3, s3, n3 = 5, 8, 160                      # m = 40 rows, out_features = 160
    x3 = jax.random.normal(kx, (b3, s3, in_features), dtype=jnp.float32)
    up_w3 = 0.05 * jax.random.normal(ku, (n3, rank), dtype=jnp.float32)
    y3 = lora_forward(x3, down_w, up_w3, 0.25, use_pallas=True,
                      tm_cap=16, tn_cap=128)
    jax.block_until_ready(y3)
    y3_ref = (x3 @ down_w.T) @ up_w3.T * 0.25
    assert y3.shape == (b3, s3, n3)
    assert jnp.allclose(y3, y3_ref, atol=1e-5), "mismatch vs reference (tiled)"

    # 4) Auto path (tiny problem -> fused-matmul fallback) matches too.
    y4 = lora_forward(x, down_w, up_w2, scale2)
    jax.block_until_ready(y4)
    assert jnp.allclose(y4, y2_ref, atol=1e-5), "mismatch vs reference (fallback)"

    print("KERNEL_OK")
</pallas_src>

<mosaic_0001>
module attributes {stable_mosaic.version = 11 : i64} {
  func.func @_lora_kernel(%arg0: i32, %arg1: i32, %arg2: memref<16x32xf32, #tpu.memory_space<vmem>>, %arg3: memref<32x4xf32, #tpu.memory_space<vmem>>, %arg4: memref<4x128xf32, #tpu.memory_space<vmem>>, %arg5: memref<1x1xf32, #tpu.memory_space<smem>>, %arg6: memref<16x128xf32, #tpu.memory_space<vmem>>) attributes {dimension_semantics = [#tpu.dimension_semantics<parallel>, #tpu.dimension_semantics<arbitrary>], iteration_bounds = array<i64: 1, 1>, scalar_prefetch = 0 : i64, scratch_operands = 0 : i64, tpu.core_type = #tpu.core_type<tc>, window_params = [{transform_indices = @transform_0, window_bounds = array<i64: 16, 32>}, {pipeline_mode = #tpu.pipeline_mode<synchronous>, transform_indices = @transform_1, window_bounds = array<i64: 32, 4>}, {transform_indices = @transform_2, window_bounds = array<i64: 4, 128>}, {transform_indices = @transform_3, window_bounds = array<i64: 1, 1>}, {transform_indices = @transform_4, window_bounds = array<i64: 16, 128>}]} {
    %c0 = arith.constant 0 : index
    %c0_0 = arith.constant 0 : index
    %0 = vector.load %arg2[%c0, %c0_0] : memref<16x32xf32, #tpu.memory_space<vmem>>, vector<16x32xf32>
    %c0_1 = arith.constant 0 : index
    %c0_2 = arith.constant 0 : index
    %1 = vector.load %arg3[%c0_1, %c0_2] : memref<32x4xf32, #tpu.memory_space<vmem>>, vector<32x4xf32>
    %cst = arith.constant dense<0.000000e+00> : vector<16x4xf32>
    %2 = tpu.matmul %0, %1, %cst {dimension_numbers = #tpu.dot_dimension_numbers<[1], [0], [0], [1], [0, 0, 1, 1], [], []>} : vector<16x32xf32>, vector<32x4xf32>, vector<16x4xf32> -> vector<16x4xf32>
    %c0_3 = arith.constant 0 : index
    %c0_4 = arith.constant 0 : index
    %3 = vector.load %arg4[%c0_3, %c0_4] : memref<4x128xf32, #tpu.memory_space<vmem>>, vector<4x128xf32>
    %cst_5 = arith.constant dense<0.000000e+00> : vector<16x128xf32>
    %4 = tpu.matmul %2, %3, %cst_5 {dimension_numbers = #tpu.dot_dimension_numbers<[1], [0], [0], [1], [0, 0, 1, 1], [], []>} : vector<16x4xf32>, vector<4x128xf32>, vector<16x128xf32> -> vector<16x128xf32>
    %c0_6 = arith.constant 0 : index
    %c0_7 = arith.constant 0 : index
    %5 = memref.load %arg5[%c0_6, %c0_7] : memref<1x1xf32, #tpu.memory_space<smem>>
    %6 = vector.broadcast %5 : f32 to vector<16x128xf32>
    %7 = arith.mulf %4, %6 : vector<16x128xf32>
    %c0_8 = arith.constant 0 : index
    %c0_9 = arith.constant 0 : index
    %8 = vector.load %arg6[%c0_8, %c0_9] : memref<16x128xf32, #tpu.memory_space<vmem>>, vector<16x128xf32>
    tpu.vector_store %arg6[%c0_8, %c0_9], %7 {strides = array<i32>} : memref<16x128xf32, #tpu.memory_space<vmem>>, vector<16x128xf32>,
    return
  }
  func.func @transform_0(%arg0: i32, %arg1: i32) -> (i32, i32) {
    %c0_i32 = arith.constant 0 : i32
    %c0_i32_0 = arith.constant 0 : i32
    return %arg0, %c0_i32 : i32, i32
  }
  func.func @transform_1(%arg0: i32, %arg1: i32) -> (i32, i32) {
    %c0_i32 = arith.constant 0 : i32
    %c0_i32_0 = arith.constant 0 : i32
    %c0_i32_1 = arith.constant 0 : i32
    return %c0_i32, %c0_i32_0 : i32, i32
  }
  func.func @transform_2(%arg0: i32, %arg1: i32) -> (i32, i32) {
    %c0_i32 = arith.constant 0 : i32
    %c0_i32_0 = arith.constant 0 : i32
    return %c0_i32, %arg1 : i32, i32
  }
  func.func @transform_3(%arg0: i32, %arg1: i32) -> (i32, i32) {
    %c0_i32 = arith.constant 0 : i32
    %c0_i32_0 = arith.constant 0 : i32
    %c0_i32_1 = arith.constant 0 : i32
    return %c0_i32, %c0_i32_0 : i32, i32
  }
  func.func @transform_4(%arg0: i32, %arg1: i32) -> (i32, i32) {
    %c0_i32 = arith.constant 0 : i32
    return %arg0, %arg1 : i32, i32
  }
}

</mosaic_0001>

<llo_original>
// kernel: tpu_custom_call.1
$region0: #{tpu_custom_call.1}
  #allocation0 [shape = 'u32[]', space=smem, size = 0x4, offset = 0x4, fixed_abs, tag = 'smem constant byte address 0x4 - core index']
  #allocation1 [shape = 'u32[72,128]{1,0:T(1,128)}', space=vmem, size = 0x9000, scoped, tag = 'internal scratch']
  #allocation2 [shape = 'f32[1,1]{1,0:T(1,128)S(6)}', space=smem, size = 0x200, scoped, tag = 'scoped memory for tpu_custom_call.1']
  %s0 = inlined_call_operand.vmem [shape: f32[16,32], index: 0, kind: input, shape index: {}]
  %s1 = inlined_call_operand.vmem [shape: f32[32,4], index: 1, kind: input, shape index: {}]
  %s2 = inlined_call_operand.vmem [shape: f32[4,128], index: 2, kind: input, shape index: {}]
  %s3 = inlined_call_operand.<no memory space> [shape: f32[1,1], index: 3, kind: input, shape index: {}]
  %s4 = inlined_call_operand.hbm [shape: f32[16,128], index: 4, kind: output, shape index: {}]
  %s5 = sld [smem:[#allocation0]]
  $region26: #{tpu_custom_call.1} parent=0
    _
  %s7 = ssub.s32 1, %s5
  %s8 = scalar_select 0, %s7, %s5
  %9 = sst [smem:[#allocation2]] %s3
  $region1: #{tpu_custom_call.1} parent=0
    #allocation3 [shape = 'u8[8192]{0}', space=vmem, size = 0x2000, scoped, tag = 'output window, operand 0, single buffered']
    #allocation4 [shape = 's32[1]{0}', space=sflag, size = 0x4, scoped, tag = 'scoped memory for tpu_custom_call.1']
    %10 = vsyncpa [#allocation4], 0
    // Predicated region
    $region2: #{tpu_custom_call.1} parent=1 // pred_check
      _
    $region3: #{tpu_custom_call.1} parent=1 // pred_check_branch
      %12 = sbr.rel (0) target = $region5
    $region4: #{tpu_custom_call.1} parent=1 // pred_region
      _
    $region5: #{tpu_custom_call.1} parent=1 // pred_fallthru
      _
    // Predicated region
    $region6: #{tpu_custom_call.1} parent=1 // pred_check
      _
    $region7: #{tpu_custom_call.1} parent=1 // pred_check_branch
      %14 = sbr.rel (0) target = $region9
    $region8: #{tpu_custom_call.1} parent=1 // pred_region
      _
    $region9: #{tpu_custom_call.1} parent=1 // pred_fallthru
      _
    // Predicated region
    $region10: #{tpu_custom_call.1} parent=1 // pred_check
      _
    $region11: #{tpu_custom_call.1} parent=1 // pred_check_branch
      %16 = sbr.rel (0) target = $region13
    $region12: #{tpu_custom_call.1} parent=1 // pred_region
      _
    $region13: #{tpu_custom_call.1} parent=1 // pred_fallthru
      _
    // Predicated region
    $region14: #{tpu_custom_call.1} parent=1 // pred_check
      _
    $region15: #{tpu_custom_call.1} parent=1 // pred_check_branch
      %18 = sbr.rel (0) target = $region17
    $region16: #{tpu_custom_call.1} parent=1 // pred_region
      _
    $region17: #{tpu_custom_call.1} parent=1 // pred_fallthru
      _
    %v19 = vld [vmem:[%s0] sm:$0xff]
    %v20 = vld [vmem:[%s0 + $0x8] sm:$0xff]
    %v21 = vld [vmem:[%s1] sm:$0xff]
    %v22 = vld [vmem:[%s1 + $0x8] sm:$0xff]
    %v23 = vld [vmem:[%s1 + $0x10] sm:$0xff]
    %v24 = vld [vmem:[%s1 + $0x18] sm:$0xff]
    %vm25 = vcmask 261120
    %v27 = vsel %vm25, %v19, 0
    %v30 = vsel %vm25, %v20, 0
    %32 = vmatpush.msra.mxu0 0.0
    %33 = vmatpush.msra.mxu0 0.0
    %34 = vmatpush.msra.mxu0 0.0
    %35 = vmatpush.msra.mxu0 0.0
    %36 = vmatpush.msra.mxu0 0.0
    %37 = vmatpush.msra.mxu0 0.0
    %38 = vmatpush.msra.mxu0 0.0
    %39 = vmatpush.msra.mxu0 0.0
    %40 = vmatpush.msra.mxu0 0.0
    %41 = vmatpush.msra.mxu0 0.0
    %42 = vmatpush.msra.mxu0 0.0
    %43 = vmatpush.msra.mxu0 0.0
    %44 = vmatpush.msra.mxu0 %v24
    %45 = vmatpush.msra.mxu0 %v23
    %46 = vmatpush.msra.mxu0 %v22
    %47 = vmatpush.msra.mxu0 %v21
    %48 = vmatmul.f32.gmra.mxu0 %v27
    %v49 = vpop.f32.mrf.mxu0
    %v50 = vadd.f32 0.0, %v49
    %51 = vmatmul.f32.gmra.mxu0 %v30
    %v52 = vpop.f32.mrf.mxu0
    %v53 = vadd.f32 0.0, %v52
    %54 = vdwg.mxu0
    %v55 = vld [vmem:[%s2] sm:$0xf]
    %vm56 = vcmask 31744
    %v58 = vsel %vm56, %v50, 0
    %v61 = vsel %vm56, %v53, 0
    %vm63 = vcmask 1043456
    %v65 = vsel %vm63, %v55, 0
    %67 = vmatpush.msra.mxu0 0.0
    %68 = vmatpush.msra.mxu0 0.0
    %69 = vmatpush.msra.mxu0 0.0
    %70 = vmatpush.msra.mxu0 0.0
    %71 = vmatpush.msra.mxu0 0.0
    %72 = vmatpush.msra.mxu0 0.0
    %73 = vmatpush.msra.mxu0 0.0
    %74 = vmatpush.msra.mxu0 0.0
    %75 = vmatpush.msra.mxu0 0.0
    %76 = vmatpush.msra.mxu0 0.0
    %77 = vmatpush.msra.mxu0 0.0
    %78 = vmatpush.msra.mxu0 0.0
    %79 = vmatpush.msra.mxu0 0.0
    %80 = vmatpush.msra.mxu0 0.0
    %81 = vmatpush.msra.mxu0 0.0
    %82 = vmatpush.msra.mxu0 %v65
    %83 = vmatmul.f32.gmra.mxu0 %v58
    %v84 = vpop.f32.mrf.mxu0
    %v85 = vadd.f32 0.0, %v84
    %86 = vmatmul.f32.gmra.mxu0 %v61
    %v87 = vpop.f32.mrf.mxu0
    %v88 = vadd.f32 0.0, %v87
    %89 = vdwg.mxu0
    %s90 = sld [smem:[#allocation2]]
    %v91 = vstv %s90
    %v92 = vmul.f32 %v85, %v91
    %v93 = vmul.f32 %v88, %v91
    %94 = vst [vmem:[#allocation3] sm:$0xff] %v92
    %95 = vst [vmem:[#allocation3 + $0x8] sm:$0xff] %v93
    // Predicated region
    $region18: #{tpu_custom_call.1} parent=1 // pred_check
      _
    $region19: #{tpu_custom_call.1} parent=1 // pred_check_branch
      %97 = sbr.rel (0) target = $region21
    $region20: #{tpu_custom_call.1} parent=1 // pred_region
      %99 = vsyncadd [#allocation4], 0
      %s100 = sshll.u32 [#allocation3], 4
      %s101 = int_to_ptr.vmem [resolvable:$true] %s100
      %s102 = sshll.u32 %s4, 4
      %s103 = int_to_ptr.hbm [resolvable:$true] %s102
      %108 = dma.vmem_to_hbm [thread:$0]  %s101, 256, %s103, [#allocation4], 128, 128, 8
    $region21: #{tpu_custom_call.1} parent=1 // pred_fallthru
      _
    // Predicated region
    $region22: #{tpu_custom_call.1} parent=1 // pred_check
      _
    $region23: #{tpu_custom_call.1} parent=1 // pred_check_branch
      %110 = sbr.rel (0) target = $region25
    $region24: #{tpu_custom_call.1} parent=1 // pred_region
      %112 = dma.done [#allocation4], 256
    $region25: #{tpu_custom_call.1} parent=1 // pred_fallthru
      _
    %113 = vsyncpa [#allocation4], 1

</llo_original>
